<compile_context>
chip_gen: v7x
topology: tpu7x:2x2x1
jax: 0.10.0
libtpu: 0.0.40
codegen_flags: <defaults>
</compile_context>

<pallas_src>
from functools import partial

import numpy as np
import jax
import jax.numpy as jnp
from jax import lax
from jax.experimental import pallas as pl
from jax.experimental.pallas import tpu as pltpu


def get_pbc_tensor(Lx, Ly, filter_size, stride):
    """Exact replica of getPbcTensor (used only by the pure-JAX reference)."""
    d = filter_size - stride
    t = jnp.eye(Lx * Ly, (Lx + d) * (Ly + d), dtype=jnp.float32)
    t = t.reshape(Lx, Ly, Lx + d, Ly + d)
    for i in range(d):
        for j in range(d):
            t = t.at[i, j, i + Lx, j + Ly].set(1.0)
    return t


# ------------------------------ Pallas kernel ------------------------------

def _make_conv_pbc_kernel(NB, C, O, K, Ho, Wo, Wp, win, offsets, stride):
    """Fused im2col + conv + bias + junk-column compaction.

    x_ref     : (NB, C, Lsrc)   bf16 flat padded image block
    w_ref     : (O, K*K*C)      f32 lane-dense weight matrix
    b_ref     : (O, 1)          f32 bias
    o_ref     : (NB, O, Ho*Wo)  f32 packed (junk-free) output block
    patch_ref : (K*K*C, win)    f32 VMEM scratch (staged im2col matrix)
    """
    KKC = K * K * C

    def kernel(x_ref, w_ref, b_ref, o_ref, patch_ref):
        w = w_ref[...]          # (O, KKC)
        bias = b_ref[...]       # (O, 1)
        for b in range(NB):                               # static unroll over batch block
            # ---- stage the K*K lane-shifted windows into one (K*K*C, win) matrix
            for t, off in enumerate(offsets):             # static unroll, K*K taps
                if stride == 1:
                    window = x_ref[b, :, off:off + win]   # (C, win) bf16, static slice
                else:
                    # TODO(synk): stride>1 path (lane-strided tap reads) is not
                    # exercised by this script; a (C,Hp,Wp)-blocked variant would
                    # also avoid DMA-ing the s-x larger flat source.
                    window = x_ref[b, :, pl.ds(off, win, stride=stride)]
                patch_ref[t * C:(t + 1) * C, :] = window.astype(jnp.float32)

            # ---- ONE MXU matmul per sample: (O, K*K*C) @ (K*K*C, win) -> (O, win)
            res = (jnp.dot(w, patch_ref[...], preferred_element_type=jnp.float32)
                   + bias).astype(o_ref.dtype)

            # ---- in-kernel compaction: drop the (Wp - Wo) junk columns per row,
            # writing a packed Ho*Wo lane block (no post-kernel slice / extra HBM pass).
            for r in range(Ho):
                o_ref[b, :, r * Wo:(r + 1) * Wo] = res[:, r * Wp:r * Wp + Wo]

    return kernel


# ----------------------------- jitted forward ------------------------------

@partial(jax.jit, static_argnums=(3, 4, 5, 6))
def _conv_pbc_forward(x, weight, bias, Lx, Ly, K, stride):
    N, C, _, _ = x.shape
    O = weight.shape[0]
    s = stride
    d = K - s
    assert d >= 0, "filter_size must be >= stride"
    Hp, Wp = Lx + d, Ly + d
    Ho = (Hp - K) // s + 1
    Wo = (Wp - K) // s + 1
    win = Ho * Wp                       # flat conv positions per sample (Wo valid + d junk per row)
    offsets = [kh * Wp + kw for kh in range(K) for kw in range(K)]

    # Exact tail bound (correctness concern from review): VMEM refs have no
    # runtime bounds check, so size the flat source to cover the furthest read.
    max_read = max(offsets) + (win - 1) * s
    Lsrc = max(Hp * Wp, max_read + 1)
    assert max_read < Lsrc and Hp * Wp <= Lsrc

    # ---- PBC step as pure data movement: x.flat zero-padded + d*d corner
    # writes, done as ONE pad + ONE scatter on the bf16 stream (same jit).
    xb = x.astype(jnp.bfloat16)
    x_flat = xb.reshape(N, C, Lx * Ly)
    xsrc = jnp.pad(x_flat, ((0, 0), (0, 0), (0, Lsrc - Lx * Ly)))
    if d > 0:
        corner_idx = jnp.asarray(
            [(Lx + i) * Wp + (Ly + j) for i in range(d) for j in range(d)],
            dtype=jnp.int32)
        corner_vals = xb[:, :, :d, :d].reshape(N, C, d * d)
        xsrc = xsrc.at[:, :, corner_idx].set(corner_vals)

    # ---- lane-dense weight matrix (O, K*K*C) and bias column.  Kept f32:
    # ~1 KB total (no HBM impact) and keeps the MXU accumulation tight.
    KKC = K * K * C
    w2 = weight.transpose(0, 2, 3, 1).reshape(O, KKC).astype(jnp.float32)
    b2 = bias.reshape(O, 1).astype(jnp.float32)

    # ---- batch blocking: amortize per-step overhead, cap by VMEM budget
    # (Pallas double-buffers each in/out block; 2*(in+out)*NB must stay far
    # below v7x's 64 MiB physical VMEM), and keep >= 2 grid steps when N > 1
    # so the "parallel" batch axis can be split across v7x's two TensorCores.
    bytes_per_sample = C * Lsrc * 2 + O * Ho * Wo * 4        # bf16 in + f32 out
    vmem_budget = 12 * 1024 * 1024
    nb = max(1, min(16, N, vmem_budget // (2 * bytes_per_sample)))
    if N > 1:
        nb = min(nb, -(-N // 2))                             # grid length >= 2
    Np = -(-N // nb) * nb
    if Np != N:
        xsrc = jnp.pad(xsrc, ((0, Np - N), (0, 0), (0, 0)))

    kernel = _make_conv_pbc_kernel(nb, C, O, K, Ho, Wo, Wp, win, offsets, s)
    out = pl.pallas_call(
        kernel,
        out_shape=jax.ShapeDtypeStruct((Np, O, Ho * Wo), jnp.float32),
        grid=(Np // nb,),
        in_specs=[
            pl.BlockSpec((nb, C, Lsrc), lambda n: (n, 0, 0)),
            pl.BlockSpec((O, KKC), lambda n: (0, 0)),
            pl.BlockSpec((O, 1), lambda n: (0, 0)),
        ],
        out_specs=pl.BlockSpec((nb, O, Ho * Wo), lambda n: (n, 0, 0)),
        scratch_shapes=[pltpu.VMEM((KKC, win), jnp.float32)],
        compiler_params=pltpu.CompilerParams(
            dimension_semantics=("parallel",),       # megacore-shard batches on v7x
            # Raise the scoped limit above v5e/v6e defaults (16/32 MiB) while
            # staying under v7x's 64 MiB physical VMEM; NB sizing above keeps
            # the actual blocks to a few MiB so double-buffering stays intact.
            vmem_limit_bytes=48 * 1024 * 1024,
        ),
    )(xsrc, w2, b2)

    if Np != N:
        out = out[:N]
    return out.reshape(N, O, Ho, Wo)     # contiguous split: metadata-only reshape


# ----------------------------- module wrapper ------------------------------

class ConvPbcPallas:
    """JAX/Pallas equivalent of convPbc (PBC tensordot + Conv2d, padding=0)."""

    def __init__(self, Lx, Ly, in_channel, out_channel, filter_size, stride, key):
        self.Lx, self.Ly = Lx, Ly
        self.C, self.O = in_channel, out_channel
        self.K, self.stride = filter_size, stride
        # deterministic nn.Conv2d-style init (uniform(-1/sqrt(fan_in), ...))
        fan_in = in_channel * filter_size * filter_size
        bound = 1.0 / np.sqrt(fan_in)
        kw_, kb_ = jax.random.split(key)
        self.weight = jax.random.uniform(
            kw_, (out_channel, in_channel, filter_size, filter_size),
            jnp.float32, -bound, bound)
        self.bias = jax.random.uniform(kb_, (out_channel,), jnp.float32, -bound, bound)

    def __call__(self, x):
        return _conv_pbc_forward(x, self.weight, self.bias,
                                 self.Lx, self.Ly, self.K, self.stride)


# ----------------------------- reference (pure JAX) ------------------------

def reference(mod: ConvPbcPallas, x):
    pbc = get_pbc_tensor(mod.Lx, mod.Ly, mod.K, mod.stride)
    xpad = jnp.tensordot(x, pbc, axes=2)
    out = lax.conv_general_dilated(
        xpad, mod.weight, (mod.stride, mod.stride), 'VALID',
        dimension_numbers=('NCHW', 'OIHW', 'NCHW'),
        precision=lax.Precision.HIGHEST)
    return out + mod.bias[None, :, None, None]


if __name__ == "__main__":
    key = jax.random.PRNGKey(0)
    k_param, k_x = jax.random.split(key)

    # small shapes consistent with the module
    N, C, Lx, Ly = 2, 4, 16, 16
    out_channel, filter_size, stride = 8, 3, 1

    mod = ConvPbcPallas(Lx, Ly, C, out_channel, filter_size, stride, k_param)
    x = jax.random.normal(k_x, (N, C, Lx, Ly), jnp.float32)

    out = jax.block_until_ready(mod(x))
    ref = jax.block_until_ready(reference(mod, x))

    np.testing.assert_allclose(np.asarray(out), np.asarray(ref), rtol=1e-2, atol=1e-2)
    assert out.shape == ref.shape == (N, out_channel, Lx // stride, Ly // stride)
    print("KERNEL_OK")
</pallas_src>

<mosaic_0001>
module attributes {stable_mosaic.version = 11 : i64} {
  func.func @kernel(%arg0: i32, %arg1: memref<1x4x326xbf16, #tpu.memory_space<vmem>>, %arg2: memref<8x36xf32, #tpu.memory_space<vmem>>, %arg3: memref<8x1xf32, #tpu.memory_space<vmem>>, %arg4: memref<1x8x256xf32, #tpu.memory_space<vmem>>, %arg5: memref<36x288xf32, #tpu.memory_space<vmem>>) attributes {dimension_semantics = [#tpu.dimension_semantics<parallel>], iteration_bounds = array<i64: 2>, scalar_prefetch = 0 : i64, scratch_operands = 1 : i64, tpu.core_type = #tpu.core_type<tc>, window_params = [{transform_indices = @transform_0, window_bounds = array<i64: 1, 4, 326>}, {pipeline_mode = #tpu.pipeline_mode<synchronous>, transform_indices = @transform_1, window_bounds = array<i64: 8, 36>}, {pipeline_mode = #tpu.pipeline_mode<synchronous>, transform_indices = @transform_2, window_bounds = array<i64: 8, 1>}, {transform_indices = @transform_3, window_bounds = array<i64: 1, 8, 256>}]} {
    %c0 = arith.constant 0 : index
    %c0_0 = arith.constant 0 : index
    %0 = vector.load %arg2[%c0, %c0_0] : memref<8x36xf32, #tpu.memory_space<vmem>>, vector<8x36xf32>
    %c0_1 = arith.constant 0 : index
    %c0_2 = arith.constant 0 : index
    %1 = vector.load %arg3[%c0_1, %c0_2] : memref<8x1xf32, #tpu.memory_space<vmem>>, vector<8x1xf32>
    %c0_3 = arith.constant 0 : index
    %c0_4 = arith.constant 0 : index
    %c0_5 = arith.constant 0 : index
    %2 = vector.load %arg1[%c0_3, %c0_4, %c0_5] : memref<1x4x326xbf16, #tpu.memory_space<vmem>>, vector<1x4x288xbf16>
    %3 = vector.shape_cast %2 : vector<1x4x288xbf16> to vector<4x288xbf16>
    %4 = arith.extf %3 : vector<4x288xbf16> to vector<4x288xf32>
    %c0_6 = arith.constant 0 : index
    %c0_7 = arith.constant 0 : index
    %5 = vector.load %arg5[%c0_6, %c0_7] : memref<36x288xf32, #tpu.memory_space<vmem>>, vector<4x288xf32>
    tpu.vector_store %arg5[%c0_6, %c0_7], %4 {strides = array<i32>} : memref<36x288xf32, #tpu.memory_space<vmem>>, vector<4x288xf32>,
    %c0_8 = arith.constant 0 : index
    %c0_9 = arith.constant 0 : index
    %c1 = arith.constant 1 : index
    %6 = vector.load %arg1[%c0_8, %c0_9, %c1] : memref<1x4x326xbf16, #tpu.memory_space<vmem>>, vector<1x4x288xbf16>
    %7 = vector.shape_cast %6 : vector<1x4x288xbf16> to vector<4x288xbf16>
    %8 = arith.extf %7 : vector<4x288xbf16> to vector<4x288xf32>
    %c4 = arith.constant 4 : index
    %c0_10 = arith.constant 0 : index
    %9 = vector.load %arg5[%c4, %c0_10] : memref<36x288xf32, #tpu.memory_space<vmem>>, vector<4x288xf32>
    tpu.vector_store %arg5[%c4, %c0_10], %8 {strides = array<i32>} : memref<36x288xf32, #tpu.memory_space<vmem>>, vector<4x288xf32>,
    %c0_11 = arith.constant 0 : index
    %c0_12 = arith.constant 0 : index
    %c2 = arith.constant 2 : index
    %10 = vector.load %arg1[%c0_11, %c0_12, %c2] : memref<1x4x326xbf16, #tpu.memory_space<vmem>>, vector<1x4x288xbf16>
    %11 = vector.shape_cast %10 : vector<1x4x288xbf16> to vector<4x288xbf16>
    %12 = arith.extf %11 : vector<4x288xbf16> to vector<4x288xf32>
    %c8 = arith.constant 8 : index
    %c0_13 = arith.constant 0 : index
    %13 = vector.load %arg5[%c8, %c0_13] : memref<36x288xf32, #tpu.memory_space<vmem>>, vector<4x288xf32>
    tpu.vector_store %arg5[%c8, %c0_13], %12 {strides = array<i32>} : memref<36x288xf32, #tpu.memory_space<vmem>>, vector<4x288xf32>,
    %c0_14 = arith.constant 0 : index
    %c0_15 = arith.constant 0 : index
    %c18 = arith.constant 18 : index
    %14 = vector.load %arg1[%c0_14, %c0_15, %c18] : memref<1x4x326xbf16, #tpu.memory_space<vmem>>, vector<1x4x288xbf16>
    %15 = vector.shape_cast %14 : vector<1x4x288xbf16> to vector<4x288xbf16>
    %16 = arith.extf %15 : vector<4x288xbf16> to vector<4x288xf32>
    %c12 = arith.constant 12 : index
    %c0_16 = arith.constant 0 : index
    %17 = vector.load %arg5[%c12, %c0_16] : memref<36x288xf32, #tpu.memory_space<vmem>>, vector<4x288xf32>
    tpu.vector_store %arg5[%c12, %c0_16], %16 {strides = array<i32>} : memref<36x288xf32, #tpu.memory_space<vmem>>, vector<4x288xf32>,
    %c0_17 = arith.constant 0 : index
    %c0_18 = arith.constant 0 : index
    %c19 = arith.constant 19 : index
    %18 = vector.load %arg1[%c0_17, %c0_18, %c19] : memref<1x4x326xbf16, #tpu.memory_space<vmem>>, vector<1x4x288xbf16>
    %19 = vector.shape_cast %18 : vector<1x4x288xbf16> to vector<4x288xbf16>
    %20 = arith.extf %19 : vector<4x288xbf16> to vector<4x288xf32>
    %c16 = arith.constant 16 : index
    %c0_19 = arith.constant 0 : index
    %21 = vector.load %arg5[%c16, %c0_19] : memref<36x288xf32, #tpu.memory_space<vmem>>, vector<4x288xf32>
    tpu.vector_store %arg5[%c16, %c0_19], %20 {strides = array<i32>} : memref<36x288xf32, #tpu.memory_space<vmem>>, vector<4x288xf32>,
    %c0_20 = arith.constant 0 : index
    %c0_21 = arith.constant 0 : index
    %c20 = arith.constant 20 : index
    %22 = vector.load %arg1[%c0_20, %c0_21, %c20] : memref<1x4x326xbf16, #tpu.memory_space<vmem>>, vector<1x4x288xbf16>
    %23 = vector.shape_cast %22 : vector<1x4x288xbf16> to vector<4x288xbf16>
    %24 = arith.extf %23 : vector<4x288xbf16> to vector<4x288xf32>
    %c20_22 = arith.constant 20 : index
    %c0_23 = arith.constant 0 : index
    %25 = vector.load %arg5[%c20_22, %c0_23] : memref<36x288xf32, #tpu.memory_space<vmem>>, vector<4x288xf32>
    tpu.vector_store %arg5[%c20_22, %c0_23], %24 {strides = array<i32>} : memref<36x288xf32, #tpu.memory_space<vmem>>, vector<4x288xf32>,
    %c0_24 = arith.constant 0 : index
    %c0_25 = arith.constant 0 : index
    %c36 = arith.constant 36 : index
    %26 = vector.load %arg1[%c0_24, %c0_25, %c36] : memref<1x4x326xbf16, #tpu.memory_space<vmem>>, vector<1x4x288xbf16>
    %27 = vector.shape_cast %26 : vector<1x4x288xbf16> to vector<4x288xbf16>
    %28 = arith.extf %27 : vector<4x288xbf16> to vector<4x288xf32>
    %c24 = arith.constant 24 : index
    %c0_26 = arith.constant 0 : index
    %29 = vector.load %arg5[%c24, %c0_26] : memref<36x288xf32, #tpu.memory_space<vmem>>, vector<4x288xf32>
    tpu.vector_store %arg5[%c24, %c0_26], %28 {strides = array<i32>} : memref<36x288xf32, #tpu.memory_space<vmem>>, vector<4x288xf32>,
    %c0_27 = arith.constant 0 : index
    %c0_28 = arith.constant 0 : index
    %c37 = arith.constant 37 : index
    %30 = vector.load %arg1[%c0_27, %c0_28, %c37] : memref<1x4x326xbf16, #tpu.memory_space<vmem>>, vector<1x4x288xbf16>
    %31 = vector.shape_cast %30 : vector<1x4x288xbf16> to vector<4x288xbf16>
    %32 = arith.extf %31 : vector<4x288xbf16> to vector<4x288xf32>
    %c28 = arith.constant 28 : index
    %c0_29 = arith.constant 0 : index
    %33 = vector.load %arg5[%c28, %c0_29] : memref<36x288xf32, #tpu.memory_space<vmem>>, vector<4x288xf32>
    tpu.vector_store %arg5[%c28, %c0_29], %32 {strides = array<i32>} : memref<36x288xf32, #tpu.memory_space<vmem>>, vector<4x288xf32>,
    %c0_30 = arith.constant 0 : index
    %c0_31 = arith.constant 0 : index
    %c38 = arith.constant 38 : index
    %34 = vector.load %arg1[%c0_30, %c0_31, %c38] : memref<1x4x326xbf16, #tpu.memory_space<vmem>>, vector<1x4x288xbf16>
    %35 = vector.shape_cast %34 : vector<1x4x288xbf16> to vector<4x288xbf16>
    %36 = arith.extf %35 : vector<4x288xbf16> to vector<4x288xf32>
    %c32 = arith.constant 32 : index
    %c0_32 = arith.constant 0 : index
    %37 = vector.load %arg5[%c32, %c0_32] : memref<36x288xf32, #tpu.memory_space<vmem>>, vector<4x288xf32>
    tpu.vector_store %arg5[%c32, %c0_32], %36 {strides = array<i32>} : memref<36x288xf32, #tpu.memory_space<vmem>>, vector<4x288xf32>,
    %c0_33 = arith.constant 0 : index
    %c0_34 = arith.constant 0 : index
    %38 = vector.load %arg5[%c0_33, %c0_34] : memref<36x288xf32, #tpu.memory_space<vmem>>, vector<36x288xf32>
    %cst = arith.constant dense<0.000000e+00> : vector<8x288xf32>
    %39 = tpu.matmul %0, %38, %cst {dimension_numbers = #tpu.dot_dimension_numbers<[1], [0], [0], [1], [0, 0, 1, 1], [], []>} : vector<8x36xf32>, vector<36x288xf32>, vector<8x288xf32> -> vector<8x288xf32>
    %40 = vector.broadcast %1 : vector<8x1xf32> to vector<8x288xf32>
    %41 = arith.addf %39, %40 : vector<8x288xf32>
    %42 = vector.extract_strided_slice %41 {offsets = [0, 0], sizes = [8, 16], strides = [1, 1]} : vector<8x288xf32> to vector<8x16xf32>
    %c0_35 = arith.constant 0 : index
    %c0_36 = arith.constant 0 : index
    %c0_37 = arith.constant 0 : index
    %43 = vector.load %arg4[%c0_35, %c0_36, %c0_37] : memref<1x8x256xf32, #tpu.memory_space<vmem>>, vector<1x8x16xf32>
    %44 = vector.shape_cast %43 : vector<1x8x16xf32> to vector<8x16xf32>
    %45 = vector.shape_cast %42 : vector<8x16xf32> to vector<1x8x16xf32>
    tpu.vector_store %arg4[%c0_35, %c0_36, %c0_37], %45 {strides = array<i32>} : memref<1x8x256xf32, #tpu.memory_space<vmem>>, vector<1x8x16xf32>,
    %46 = vector.extract_strided_slice %41 {offsets = [0, 18], sizes = [8, 16], strides = [1, 1]} : vector<8x288xf32> to vector<8x16xf32>
    %c0_38 = arith.constant 0 : index
    %c0_39 = arith.constant 0 : index
    %c16_40 = arith.constant 16 : index
    %47 = vector.load %arg4[%c0_38, %c0_39, %c16_40] : memref<1x8x256xf32, #tpu.memory_space<vmem>>, vector<1x8x16xf32>
    %48 = vector.shape_cast %47 : vector<1x8x16xf32> to vector<8x16xf32>
    %49 = vector.shape_cast %46 : vector<8x16xf32> to vector<1x8x16xf32>
    tpu.vector_store %arg4[%c0_38, %c0_39, %c16_40], %49 {strides = array<i32>} : memref<1x8x256xf32, #tpu.memory_space<vmem>>, vector<1x8x16xf32>,
    %50 = vector.extract_strided_slice %41 {offsets = [0, 36], sizes = [8, 16], strides = [1, 1]} : vector<8x288xf32> to vector<8x16xf32>
    %c0_41 = arith.constant 0 : index
    %c0_42 = arith.constant 0 : index
    %c32_43 = arith.constant 32 : index
    %51 = vector.load %arg4[%c0_41, %c0_42, %c32_43] : memref<1x8x256xf32, #tpu.memory_space<vmem>>, vector<1x8x16xf32>
    %52 = vector.shape_cast %51 : vector<1x8x16xf32> to vector<8x16xf32>
    %53 = vector.shape_cast %50 : vector<8x16xf32> to vector<1x8x16xf32>
    tpu.vector_store %arg4[%c0_41, %c0_42, %c32_43], %53 {strides = array<i32>} : memref<1x8x256xf32, #tpu.memory_space<vmem>>, vector<1x8x16xf32>,
    %54 = vector.extract_strided_slice %41 {offsets = [0, 54], sizes = [8, 16], strides = [1, 1]} : vector<8x288xf32> to vector<8x16xf32>
    %c0_44 = arith.constant 0 : index
    %c0_45 = arith.constant 0 : index
    %c48 = arith.constant 48 : index
    %55 = vector.load %arg4[%c0_44, %c0_45, %c48] : memref<1x8x256xf32, #tpu.memory_space<vmem>>, vector<1x8x16xf32>
    %56 = vector.shape_cast %55 : vector<1x8x16xf32> to vector<8x16xf32>
    %57 = vector.shape_cast %54 : vector<8x16xf32> to vector<1x8x16xf32>
    tpu.vector_store %arg4[%c0_44, %c0_45, %c48], %57 {strides = array<i32>} : memref<1x8x256xf32, #tpu.memory_space<vmem>>, vector<1x8x16xf32>,
    %58 = vector.extract_strided_slice %41 {offsets = [0, 72], sizes = [8, 16], strides = [1, 1]} : vector<8x288xf32> to vector<8x16xf32>
    %c0_46 = arith.constant 0 : index
    %c0_47 = arith.constant 0 : index
    %c64 = arith.constant 64 : index
    %59 = vector.load %arg4[%c0_46, %c0_47, %c64] : memref<1x8x256xf32, #tpu.memory_space<vmem>>, vector<1x8x16xf32>
    %60 = vector.shape_cast %59 : vector<1x8x16xf32> to vector<8x16xf32>
    %61 = vector.shape_cast %58 : vector<8x16xf32> to vector<1x8x16xf32>
    tpu.vector_store %arg4[%c0_46, %c0_47, %c64], %61 {strides = array<i32>} : memref<1x8x256xf32, #tpu.memory_space<vmem>>, vector<1x8x16xf32>,
    %62 = vector.extract_strided_slice %41 {offsets = [0, 90], sizes = [8, 16], strides = [1, 1]} : vector<8x288xf32> to vector<8x16xf32>
    %c0_48 = arith.constant 0 : index
    %c0_49 = arith.constant 0 : index
    %c80 = arith.constant 80 : index
    %63 = vector.load %arg4[%c0_48, %c0_49, %c80] : memref<1x8x256xf32, #tpu.memory_space<vmem>>, vector<1x8x16xf32>
    %64 = vector.shape_cast %63 : vector<1x8x16xf32> to vector<8x16xf32>
    %65 = vector.shape_cast %62 : vector<8x16xf32> to vector<1x8x16xf32>
    tpu.vector_store %arg4[%c0_48, %c0_49, %c80], %65 {strides = array<i32>} : memref<1x8x256xf32, #tpu.memory_space<vmem>>, vector<1x8x16xf32>,
    %66 = vector.extract_strided_slice %41 {offsets = [0, 108], sizes = [8, 16], strides = [1, 1]} : vector<8x288xf32> to vector<8x16xf32>
    %c0_50 = arith.constant 0 : index
    %c0_51 = arith.constant 0 : index
    %c96 = arith.constant 96 : index
    %67 = vector.load %arg4[%c0_50, %c0_51, %c96] : memref<1x8x256xf32, #tpu.memory_space<vmem>>, vector<1x8x16xf32>
    %68 = vector.shape_cast %67 : vector<1x8x16xf32> to vector<8x16xf32>
    %69 = vector.shape_cast %66 : vector<8x16xf32> to vector<1x8x16xf32>
    tpu.vector_store %arg4[%c0_50, %c0_51, %c96], %69 {strides = array<i32>} : memref<1x8x256xf32, #tpu.memory_space<vmem>>, vector<1x8x16xf32>,
    %70 = vector.extract_strided_slice %41 {offsets = [0, 126], sizes = [8, 16], strides = [1, 1]} : vector<8x288xf32> to vector<8x16xf32>
    %c0_52 = arith.constant 0 : index
    %c0_53 = arith.constant 0 : index
    %c112 = arith.constant 112 : index
    %71 = vector.load %arg4[%c0_52, %c0_53, %c112] : memref<1x8x256xf32, #tpu.memory_space<vmem>>, vector<1x8x16xf32>
    %72 = vector.shape_cast %71 : vector<1x8x16xf32> to vector<8x16xf32>
    %73 = vector.shape_cast %70 : vector<8x16xf32> to vector<1x8x16xf32>
    tpu.vector_store %arg4[%c0_52, %c0_53, %c112], %73 {strides = array<i32>} : memref<1x8x256xf32, #tpu.memory_space<vmem>>, vector<1x8x16xf32>,
    %74 = vector.extract_strided_slice %41 {offsets = [0, 144], sizes = [8, 16], strides = [1, 1]} : vector<8x288xf32> to vector<8x16xf32>
    %c0_54 = arith.constant 0 : index
    %c0_55 = arith.constant 0 : index
    %c128 = arith.constant 128 : index
    %75 = vector.load %arg4[%c0_54, %c0_55, %c128] : memref<1x8x256xf32, #tpu.memory_space<vmem>>, vector<1x8x16xf32>
    %76 = vector.shape_cast %75 : vector<1x8x16xf32> to vector<8x16xf32>
    %77 = vector.shape_cast %74 : vector<8x16xf32> to vector<1x8x16xf32>
    tpu.vector_store %arg4[%c0_54, %c0_55, %c128], %77 {strides = array<i32>} : memref<1x8x256xf32, #tpu.memory_space<vmem>>, vector<1x8x16xf32>,
    %78 = vector.extract_strided_slice %41 {offsets = [0, 162], sizes = [8, 16], strides = [1, 1]} : vector<8x288xf32> to vector<8x16xf32>
    %c0_56 = arith.constant 0 : index
    %c0_57 = arith.constant 0 : index
    %c144 = arith.constant 144 : index
    %79 = vector.load %arg4[%c0_56, %c0_57, %c144] : memref<1x8x256xf32, #tpu.memory_space<vmem>>, vector<1x8x16xf32>
    %80 = vector.shape_cast %79 : vector<1x8x16xf32> to vector<8x16xf32>
    %81 = vector.shape_cast %78 : vector<8x16xf32> to vector<1x8x16xf32>
    tpu.vector_store %arg4[%c0_56, %c0_57, %c144], %81 {strides = array<i32>} : memref<1x8x256xf32, #tpu.memory_space<vmem>>, vector<1x8x16xf32>,
    %82 = vector.extract_strided_slice %41 {offsets = [0, 180], sizes = [8, 16], strides = [1, 1]} : vector<8x288xf32> to vector<8x16xf32>
    %c0_58 = arith.constant 0 : index
    %c0_59 = arith.constant 0 : index
    %c160 = arith.constant 160 : index
    %83 = vector.load %arg4[%c0_58, %c0_59, %c160] : memref<1x8x256xf32, #tpu.memory_space<vmem>>, vector<1x8x16xf32>
    %84 = vector.shape_cast %83 : vector<1x8x16xf32> to vector<8x16xf32>
    %85 = vector.shape_cast %82 : vector<8x16xf32> to vector<1x8x16xf32>
    tpu.vector_store %arg4[%c0_58, %c0_59, %c160], %85 {strides = array<i32>} : memref<1x8x256xf32, #tpu.memory_space<vmem>>, vector<1x8x16xf32>,
    %86 = vector.extract_strided_slice %41 {offsets = [0, 198], sizes = [8, 16], strides = [1, 1]} : vector<8x288xf32> to vector<8x16xf32>
    %c0_60 = arith.constant 0 : index
    %c0_61 = arith.constant 0 : index
    %c176 = arith.constant 176 : index
    %87 = vector.load %arg4[%c0_60, %c0_61, %c176] : memref<1x8x256xf32, #tpu.memory_space<vmem>>, vector<1x8x16xf32>
    %88 = vector.shape_cast %87 : vector<1x8x16xf32> to vector<8x16xf32>
    %89 = vector.shape_cast %86 : vector<8x16xf32> to vector<1x8x16xf32>
    tpu.vector_store %arg4[%c0_60, %c0_61, %c176], %89 {strides = array<i32>} : memref<1x8x256xf32, #tpu.memory_space<vmem>>, vector<1x8x16xf32>,
    %90 = vector.extract_strided_slice %41 {offsets = [0, 216], sizes = [8, 16], strides = [1, 1]} : vector<8x288xf32> to vector<8x16xf32>
    %c0_62 = arith.constant 0 : index
    %c0_63 = arith.constant 0 : index
    %c192 = arith.constant 192 : index
    %91 = vector.load %arg4[%c0_62, %c0_63, %c192] : memref<1x8x256xf32, #tpu.memory_space<vmem>>, vector<1x8x16xf32>
    %92 = vector.shape_cast %91 : vector<1x8x16xf32> to vector<8x16xf32>
    %93 = vector.shape_cast %90 : vector<8x16xf32> to vector<1x8x16xf32>
    tpu.vector_store %arg4[%c0_62, %c0_63, %c192], %93 {strides = array<i32>} : memref<1x8x256xf32, #tpu.memory_space<vmem>>, vector<1x8x16xf32>,
    %94 = vector.extract_strided_slice %41 {offsets = [0, 234], sizes = [8, 16], strides = [1, 1]} : vector<8x288xf32> to vector<8x16xf32>
    %c0_64 = arith.constant 0 : index
    %c0_65 = arith.constant 0 : index
    %c208 = arith.constant 208 : index
    %95 = vector.load %arg4[%c0_64, %c0_65, %c208] : memref<1x8x256xf32, #tpu.memory_space<vmem>>, vector<1x8x16xf32>
    %96 = vector.shape_cast %95 : vector<1x8x16xf32> to vector<8x16xf32>
    %97 = vector.shape_cast %94 : vector<8x16xf32> to vector<1x8x16xf32>
    tpu.vector_store %arg4[%c0_64, %c0_65, %c208], %97 {strides = array<i32>} : memref<1x8x256xf32, #tpu.memory_space<vmem>>, vector<1x8x16xf32>,
    %98 = vector.extract_strided_slice %41 {offsets = [0, 252], sizes = [8, 16], strides = [1, 1]} : vector<8x288xf32> to vector<8x16xf32>
    %c0_66 = arith.constant 0 : index
    %c0_67 = arith.constant 0 : index
    %c224 = arith.constant 224 : index
    %99 = vector.load %arg4[%c0_66, %c0_67, %c224] : memref<1x8x256xf32, #tpu.memory_space<vmem>>, vector<1x8x16xf32>
    %100 = vector.shape_cast %99 : vector<1x8x16xf32> to vector<8x16xf32>
    %101 = vector.shape_cast %98 : vector<8x16xf32> to vector<1x8x16xf32>
    tpu.vector_store %arg4[%c0_66, %c0_67, %c224], %101 {strides = array<i32>} : memref<1x8x256xf32, #tpu.memory_space<vmem>>, vector<1x8x16xf32>,
    %102 = vector.extract_strided_slice %41 {offsets = [0, 270], sizes = [8, 16], strides = [1, 1]} : vector<8x288xf32> to vector<8x16xf32>
    %c0_68 = arith.constant 0 : index
    %c0_69 = arith.constant 0 : index
    %c240 = arith.constant 240 : index
    %103 = vector.load %arg4[%c0_68, %c0_69, %c240] : memref<1x8x256xf32, #tpu.memory_space<vmem>>, vector<1x8x16xf32>
    %104 = vector.shape_cast %103 : vector<1x8x16xf32> to vector<8x16xf32>
    %105 = vector.shape_cast %102 : vector<8x16xf32> to vector<1x8x16xf32>
    tpu.vector_store %arg4[%c0_68, %c0_69, %c240], %105 {strides = array<i32>} : memref<1x8x256xf32, #tpu.memory_space<vmem>>, vector<1x8x16xf32>,
    return
  }
  func.func @transform_0(%arg0: i32) -> (i32, i32, i32) {
    %c0_i32 = arith.constant 0 : i32
    %c0_i32_0 = arith.constant 0 : i32
    %c0_i32_1 = arith.constant 0 : i32
    return %arg0, %c0_i32, %c0_i32_0 : i32, i32, i32
  }
  func.func @transform_1(%arg0: i32) -> (i32, i32) {
    %c0_i32 = arith.constant 0 : i32
    %c0_i32_0 = arith.constant 0 : i32
    %c0_i32_1 = arith.constant 0 : i32
    return %c0_i32, %c0_i32_0 : i32, i32
  }
  func.func @transform_2(%arg0: i32) -> (i32, i32) {
    %c0_i32 = arith.constant 0 : i32
    %c0_i32_0 = arith.constant 0 : i32
    %c0_i32_1 = arith.constant 0 : i32
    return %c0_i32, %c0_i32_0 : i32, i32
  }
  func.func @transform_3(%arg0: i32) -> (i32, i32, i32) {
    %c0_i32 = arith.constant 0 : i32
    %c0_i32_0 = arith.constant 0 : i32
    %c0_i32_1 = arith.constant 0 : i32
    return %arg0, %c0_i32, %c0_i32_0 : i32, i32, i32
  }
}

</mosaic_0001>

<llo_original>
// kernel: _conv_pbc_forward.1
$region0: #{_conv_pbc_forward.1}
  #allocation0 [shape = 'u32[]', space=smem, size = 0x4, offset = 0x4, fixed_abs, tag = 'smem constant byte address 0x4 - core index']
  #allocation1 [shape = 'u32[144,128]{1,0:T(1,128)}', space=vmem, size = 0x12000, scoped, tag = 'internal scratch']
  #allocation2 [shape = 'f32[36,288]{1,0:T(8,128)}', space=vmem, size = 0xf000, scoped, tag = 'scratch operand']
  %s0 = inlined_call_operand.vmem [shape: bf16[2,4,326], index: 0, kind: input, shape index: {}]
  %s1 = inlined_call_operand.vmem [shape: f32[8,36], index: 1, kind: input, shape index: {}]
  %s2 = inlined_call_operand.vmem [shape: f32[8,1], index: 2, kind: input, shape index: {}]
  %s3 = inlined_call_operand.vmem [shape: f32[2,8,256], index: 3, kind: output, shape index: {}]
  %s4 = sld [smem:[#allocation0]]
  $region45: #{_conv_pbc_forward.1} parent=0
    _
  %s6 = ssub.s32 1, %s4
  %s7 = scalar_select 0, %s6, %s4
  loop: start=0, step=1, limit=4
  $region2: #{_conv_pbc_forward.1} parent=0 // loop_pre_header
    _
  $region3: #{_conv_pbc_forward.1} parent=0 // loop_header
    %s9 = sphi 0, %s13
    %p10 = scmp.ge.s32.totalorder %s9, 4
    %s19 = sphi 0, %s21
    %s22 = sphi 0, %s19
    %s23 = sphi 0, %s22
    %s39 = sphi 0, %s23
    %s43 = sphi 0, %s43
    %s45 = sphi 0, %s43
    %s46 = sphi 0, %s45
    %s60 = sphi 0, %s46
    %s64 = sphi 0, %s64
    %s66 = sphi 0, %s64
    %s67 = sphi 0, %s66
    %s81 = sphi 0, %s67
    %s87 = sphi 0, %s89
    %s90 = sphi 0, %s87
    %s91 = sphi 0, %s90
    %s107 = sphi 0, %s91
  $region4: #{_conv_pbc_forward.1} parent=0 // loop_header_branch
    %12 = sbr.rel (%p10) target = $region8
  $region5: #{_conv_pbc_forward.1} parent=0 // loop_body
    %s14 = ssub.s32 %s9, 1
    %s15 = ssub.s32 %s9, 2
    %s16 = sadd.s32 %s9, 1
    %s17 = ssub.s32 %s9, %s16
    %p18 = scmp.eq.s32.totalorder %s17, 0
    %s20 = sadd.s32 %s19, 1
    %s21 = scalar_select %p18, %s19, %s20
    %p24 = pneg %p18
    %p25 = scmp.eq.s32.totalorder %s9, 1
    %p26 = por %p24, %p25
    %p27 = scmp.ne.s32.totalorder %s19, %s22
    %p28 = scmp.eq.s32.totalorder %s9, 0
    %p29 = por %p27, %p28
    %p30 = scmp.ne.s32.totalorder %s19, %s22
    %p31 = scmp.eq.s32.totalorder %s14, 1
    %p32 = por %p30, %p31
    %p33 = scmp.ne.s32.totalorder %s22, %s23
    %p34 = scmp.eq.s32.totalorder %s14, 0
    %p35 = por %p33, %p34
    %p36 = scmp.ne.s32.totalorder %s22, %s23
    %p37 = scmp.eq.s32.totalorder %s15, 1
    %p38 = por %p36, %p37
    %p40 = scmp.ne.s32.totalorder %s23, %s39
    %p41 = scmp.eq.s32.totalorder %s15, 0
    %p42 = por %p40, %p41
    %s44 = sadd.s32 %s43, 1
    %p47 = scmp.eq.s32.totalorder %s9, 1
    %p48 = scmp.ne.s32.totalorder %s43, %s45
    %p49 = scmp.eq.s32.totalorder %s9, 0
    %p50 = por %p48, %p49
    %p51 = scmp.ne.s32.totalorder %s43, %s45
    %p52 = scmp.eq.s32.totalorder %s14, 1
    %p53 = por %p51, %p52
    %p54 = scmp.ne.s32.totalorder %s45, %s46
    %p55 = scmp.eq.s32.totalorder %s14, 0
    %p56 = por %p54, %p55
    %p57 = scmp.ne.s32.totalorder %s45, %s46
    %p58 = scmp.eq.s32.totalorder %s15, 1
    %p59 = por %p57, %p58
    %p61 = scmp.ne.s32.totalorder %s46, %s60
    %p62 = scmp.eq.s32.totalorder %s15, 0
    %p63 = por %p61, %p62
    %s65 = sadd.s32 %s64, 1
    %p68 = scmp.eq.s32.totalorder %s9, 1
    %p69 = scmp.ne.s32.totalorder %s64, %s66
    %p70 = scmp.eq.s32.totalorder %s9, 0
    %p71 = por %p69, %p70
    %p72 = scmp.ne.s32.totalorder %s64, %s66
    %p73 = scmp.eq.s32.totalorder %s14, 1
    %p74 = por %p72, %p73
    %p75 = scmp.ne.s32.totalorder %s66, %s67
    %p76 = scmp.eq.s32.totalorder %s14, 0
    %p77 = por %p75, %p76
    %p78 = scmp.ne.s32.totalorder %s66, %s67
    %p79 = scmp.eq.s32.totalorder %s15, 1
    %p80 = por %p78, %p79
    %p82 = scmp.ne.s32.totalorder %s67, %s81
    %p83 = scmp.eq.s32.totalorder %s15, 0
    %p84 = por %p82, %p83
    %s85 = ssub.s32 %s9, %s16
    %p86 = scmp.eq.s32.totalorder %s85, 0
    %s88 = sadd.s32 %s87, 1
    %s89 = scalar_select %p86, %s87, %s88
    %p92 = pneg %p86
    %p93 = scmp.eq.s32.totalorder %s9, 1
    %p94 = por %p92, %p93
    %p95 = scmp.ne.s32.totalorder %s87, %s90
    %p96 = scmp.eq.s32.totalorder %s9, 0
    %p97 = por %p95, %p96
    %p98 = scmp.ne.s32.totalorder %s87, %s90
    %p99 = scmp.eq.s32.totalorder %s14, 1
    %p100 = por %p98, %p99
    %p101 = scmp.ne.s32.totalorder %s90, %s91
    %p102 = scmp.eq.s32.totalorder %s14, 0
    %p103 = por %p101, %p102
    %p104 = scmp.ne.s32.totalorder %s90, %s91
    %p105 = scmp.eq.s32.totalorder %s15, 1
    %p106 = por %p104, %p105
    %p108 = scmp.ne.s32.totalorder %s91, %s107
    %p109 = scmp.eq.s32.totalorder %s15, 0
    %p110 = por %p108, %p109
    %p111 = scmp.le.s32.totalorder 1, %s9
    %p112 = scmp.lt.s32.totalorder %s9, 3
    %p113 = pnand %p111, %p112
    %p114 = pneg %p113
    // Predicated region
    $region9: #{_conv_pbc_forward.1} parent=5 // pred_check
      _
    $region10: #{_conv_pbc_forward.1} parent=5 // pred_check_branch
      %116 = sbr.rel (%p113) target = $region12
    $region11: #{_conv_pbc_forward.1} parent=5 // pred_region
      %s117 = ssub.s32 %s9, 1
      // Predicated region
      $region13: #{_conv_pbc_forward.1} parent=11 // pred_check
        %p118 = pneg %p56
      $region14: #{_conv_pbc_forward.1} parent=11 // pred_check_branch
        %120 = sbr.rel (%p118) target = $region16
      $region15: #{_conv_pbc_forward.1} parent=11 // pred_region
        _
      $region16: #{_conv_pbc_forward.1} parent=11 // pred_fallthru
        _
      // Predicated region
      $region17: #{_conv_pbc_forward.1} parent=11 // pred_check
        %p121 = pneg %p77
      $region18: #{_conv_pbc_forward.1} parent=11 // pred_check_branch
        %123 = sbr.rel (%p121) target = $region20
      $region19: #{_conv_pbc_forward.1} parent=11 // pred_region
        _
      $region20: #{_conv_pbc_forward.1} parent=11 // pred_fallthru
        _
    $region12: #{_conv_pbc_forward.1} parent=5 // pred_fallthru
      _
    %p124 = scmp.lt.s32.totalorder %s9, 2
    // Predicated region
    $region21: #{_conv_pbc_forward.1} parent=5 // pred_check
      %p125 = pneg %p124
    $region22: #{_conv_pbc_forward.1} parent=5 // pred_check_branch
      %127 = sbr.rel (%p125) target = $region24
    $region23: #{_conv_pbc_forward.1} parent=5 // pred_region
      // Predicated region
      $region25: #{_conv_pbc_forward.1} parent=23 // pred_check
        %p128 = pneg %p29
      $region26: #{_conv_pbc_forward.1} parent=23 // pred_check_branch
        %130 = sbr.rel (%p128) target = $region28
      $region27: #{_conv_pbc_forward.1} parent=23 // pred_region
        %p131 = scmp.lt.s32.totalorder %s9, 1
        %s132 = scalar_select %p131, %s9, 1
        %s133 = smul.addr %s132, 3
        %s134 = smul.addr %s133, 2
        %s135 = scalar_lea.vmem %s0, %s134
      $region28: #{_conv_pbc_forward.1} parent=23 // pred_fallthru
        _
    $region24: #{_conv_pbc_forward.1} parent=5 // pred_fallthru
      _
    %p136 = scmp.le.s32.totalorder 1, %s9
    %p137 = scmp.lt.s32.totalorder %s9, 3
    %p138 = pnand %p136, %p137
    %p139 = pneg %p138
    // Predicated region
    $region29: #{_conv_pbc_forward.1} parent=5 // pred_check
      _
    $region30: #{_conv_pbc_forward.1} parent=5 // pred_check_branch
      %141 = sbr.rel (%p138) target = $region32
    $region31: #{_conv_pbc_forward.1} parent=5 // pred_region
      %s142 = ssub.s32 %s9, 1
      %p143 = scmp.lt.s32.totalorder %s14, 1
      %s144 = scalar_select %p143, %s14, 1
      %s145 = smul.addr %s144, 3
      %s146 = smul.addr %s145, 2
      %s147 = scalar_lea.vmem %s0, %s146
      %p148 = pneg %p35
      %p149 = pneg %p32
      %p150 = pneg %p56
      %p151 = pneg %p53
      %p152 = pneg %p77
      %p153 = pneg %p74
      %p154 = pneg %p103
      %p155 = pneg %p100
      %p156 = scmp.lt.s32.totalorder %s14, 1
      %s157 = scalar_select %p156, %s14, 1
      %s158 = smul.addr %s157, 2
      %s159 = smul.addr %s158, 8
      %s160 = scalar_lea.vmem %s3, %s159
      %p161 = scmp.lt.s32.totalorder %s14, 1
      %s162 = scalar_select %p161, %s14, 1
      %s163 = smul.addr %s162, 3
      %s164 = smul.addr %s163, 2
      %s165 = scalar_lea.vmem %s0, %s164
      %p166 = scmp.lt.s32.totalorder %s14, 1
      %s167 = scalar_select %p166, %s14, 1
      %s168 = smul.addr %s167, 2
      %s169 = smul.addr %s168, 8
      %s170 = scalar_lea.vmem %s3, %s169
      %v171 = vld [vmem:[%s1] sm:$0xff]
      %v172 = vld [vmem:[%s2] sm:$0xff]
      %v173 = vld [vmem:[%s165] sm:$0x3f]
      %v174 = vunpack.c.l.bf16 %v173
      %v175 = vunpack.c.h.bf16 %v173
      %v177 = vcombine.high %v174, %v174
      %179 = vst [vmem:[#allocation2] sm:$0xf] %v174
      %180 = vst [vmem:[#allocation2 + $0x8] sm:$0xf] %v177
      %vm181 = vcmask 257024
      %182 = vst.msk [vmem:[#allocation2 + $0x10] sm:$0xf] %vm181, %v175
      %v183 = vld [vmem:[%s165] sm:$0x3f]
      %v184 = vunpack.c.l.bf16 %v183
      %v185 = vunpack.c.h.bf16 %v183
      %v188 = vcombine.low %v184, %v184
      %v189 = vcombine.low %v185, %v185
      %190 = vrot.lane.b32.xlu0 %v188, 127
      %v191 = vpop.permute.xlu0 %190
      %192 = vrot.lane.b32.xlu0 %v184, 127
      %v193 = vpop.permute.xlu0 %192
      %194 = vrot.lane.b32.xlu0 %v189, 127
      %v195 = vpop.permute.xlu0 %194
      %vm196 = vcmask 1039360
      %v197 = vsel %vm196, %v191, %v193
      %v198 = vsel %vm196, %v193, %v195
      %202 = vst [vmem:[#allocation2] sm:$0xf0] %v197
      %203 = vst [vmem:[#allocation2 + $0x8] sm:$0xf0] %v198
      %vm204 = vcmask 261124
      %205 = vst.msk [vmem:[#allocation2 + $0x10] sm:$0xf0] %vm204, %v195
      %v206 = vld [vmem:[%s165] sm:$0x3f]
      %v207 = vunpack.c.l.bf16 %v206
      %v208 = vunpack.c.h.bf16 %v206
      %v211 = vcombine.high %v207, %v207
      %212 = vrot.lane.b32.xlu0 %v207, 126
      %v213 = vpop.permute.xlu0 %212
      %214 = vrot.lane.b32.xlu0 %v211, 126
      %v215 = vpop.permute.xlu0 %214
      %216 = vrot.lane.b32.xlu0 %v208, 126
      %v217 = vpop.permute.xlu0 %216
      %vm218 = vcmask 1031168
      %v219 = vsel %vm218, %v213, %v215
      %v220 = vsel %vm218, %v215, %v217
      %224 = vst [vmem:[#allocation2 + $0x18] sm:$0xf] %v219
      %225 = vst [vmem:[#allocation2 + $0x20] sm:$0xf] %v220
      %226 = vst.msk [vmem:[#allocation2 + $0x28] sm:$0xf] %vm181, %v217
      %v227 = vld [vmem:[%s165] sm:$0x3f]
      %v228 = vunpack.c.l.bf16 %v227
      %v229 = vunpack.c.h.bf16 %v227
      %v232 = vcombine.low %v228, %v228
      %v233 = vcombine.low %v229, %v229
      %234 = vrot.lane.b32.xlu0 %v232, 110
      %v235 = vpop.permute.xlu0 %234
      %236 = vrot.lane.b32.xlu0 %v228, 110
      %v237 = vpop.permute.xlu0 %236
      %238 = vrot.lane.b32.xlu0 %v233, 110
      %v239 = vpop.permute.xlu0 %238
      %vm240 = vcmask 900096
      %v241 = vsel %vm240, %v235, %v237
      %v242 = vsel %vm240, %v237, %v239
      %246 = vst [vmem:[#allocation2 + $0x18] sm:$0xf0] %v241
      %247 = vst [vmem:[#allocation2 + $0x20] sm:$0xf0] %v242
      %248 = vst.msk [vmem:[#allocation2 + $0x28] sm:$0xf0] %vm204, %v239
      %v249 = vld [vmem:[%s165] sm:$0x3f]
      %v250 = vunpack.c.l.bf16 %v249
      %v251 = vunpack.c.h.bf16 %v249
      %v254 = vcombine.high %v250, %v250
      %255 = vrot.lane.b32.xlu0 %v250, 109
      %v256 = vpop.permute.xlu0 %255
      %257 = vrot.lane.b32.xlu0 %v254, 109
      %v258 = vpop.permute.xlu0 %257
      %259 = vrot.lane.b32.xlu0 %v251, 109
      %v260 = vpop.permute.xlu0 %259
      %vm261 = vcmask 891904
      %v262 = vsel %vm261, %v256, %v258
      %v263 = vsel %vm261, %v258, %v260
      %267 = vst [vmem:[#allocation2 + $0x30] sm:$0xf] %v262
      %268 = vst [vmem:[#allocation2 + $0x38] sm:$0xf] %v263
      %269 = vst.msk [vmem:[#allocation2 + $0x40] sm:$0xf] %vm181, %v260
      %v270 = vld [vmem:[%s165] sm:$0x3f]
      %v271 = vunpack.c.l.bf16 %v270
      %v272 = vunpack.c.h.bf16 %v270
      %v275 = vcombine.low %v271, %v271
      %v276 = vcombine.low %v272, %v272
      %277 = vrot.lane.b32.xlu0 %v275, 108
      %v278 = vpop.permute.xlu0 %277
      %279 = vrot.lane.b32.xlu0 %v271, 108
      %v280 = vpop.permute.xlu0 %279
      %281 = vrot.lane.b32.xlu0 %v276, 108
      %v282 = vpop.permute.xlu0 %281
      %vm283 = vcmask 883712
      %v284 = vsel %vm283, %v278, %v280
      %v285 = vsel %vm283, %v280, %v282
      %289 = vst [vmem:[#allocation2 + $0x30] sm:$0xf0] %v284
      %290 = vst [vmem:[#allocation2 + $0x38] sm:$0xf0] %v285
      %291 = vst.msk [vmem:[#allocation2 + $0x40] sm:$0xf0] %vm204, %v282
      %v292 = vld [vmem:[%s165] sm:$0x3f]
      %v293 = vunpack.c.l.bf16 %v292
      %v294 = vunpack.c.h.bf16 %v292
      %v297 = vcombine.high %v293, %v293
      %298 = vrot.lane.b32.xlu0 %v293, 92
      %v299 = vpop.permute.xlu0 %298
      %300 = vrot.lane.b32.xlu0 %v297, 92
      %v301 = vpop.permute.xlu0 %300
      %302 = vrot.lane.b32.xlu0 %v294, 92
      %v303 = vpop.permute.xlu0 %302
      %vm304 = vcmask 752640
      %v305 = vsel %vm304, %v299, %v301
      %v306 = vsel %vm304, %v301, %v303
      %310 = vst [vmem:[#allocation2 + $0x48] sm:$0xf] %v305
      %311 = vst [vmem:[#allocation2 + $0x50] sm:$0xf] %v306
      %312 = vst.msk [vmem:[#allocation2 + $0x58] sm:$0xf] %vm181, %v303
      %v313 = vld [vmem:[%s165] sm:$0x3f]
      %v314 = vunpack.c.l.bf16 %v313
      %v315 = vunpack.c.h.bf16 %v313
      %v318 = vcombine.low %v314, %v314
      %v319 = vcombine.low %v315, %v315
      %320 = vrot.lane.b32.xlu0 %v318, 91
      %v321 = vpop.permute.xlu0 %320
      %322 = vrot.lane.b32.xlu0 %v314, 91
      %v323 = vpop.permute.xlu0 %322
      %324 = vrot.lane.b32.xlu0 %v319, 91
      %v325 = vpop.permute.xlu0 %324
      %vm326 = vcmask 744448
      %v327 = vsel %vm326, %v321, %v323
      %v328 = vsel %vm326, %v323, %v325
      %332 = vst [vmem:[#allocation2 + $0x48] sm:$0xf0] %v327
      %333 = vst [vmem:[#allocation2 + $0x50] sm:$0xf0] %v328
      %334 = vst.msk [vmem:[#allocation2 + $0x58] sm:$0xf0] %vm204, %v325
      %v335 = vld [vmem:[%s165] sm:$0x3f]
      %v336 = vunpack.c.l.bf16 %v335
      %v337 = vunpack.c.h.bf16 %v335
      %v340 = vcombine.high %v336, %v336
      %341 = vrot.lane.b32.xlu0 %v336, 90
      %v342 = vpop.permute.xlu0 %341
      %343 = vrot.lane.b32.xlu0 %v340, 90
      %v344 = vpop.permute.xlu0 %343
      %345 = vrot.lane.b32.xlu0 %v337, 90
      %v346 = vpop.permute.xlu0 %345
      %vm347 = vcmask 736256
      %v348 = vsel %vm347, %v342, %v344
      %v349 = vsel %vm347, %v344, %v346
      %353 = vst [vmem:[#allocation2 + $0x60] sm:$0xf] %v348
      %354 = vst [vmem:[#allocation2 + $0x68] sm:$0xf] %v349
      %355 = vst.msk [vmem:[#allocation2 + $0x70] sm:$0xf] %vm181, %v346
      %v356 = vld [vmem:[#allocation2] sm:$0xff]
      %v357 = vld [vmem:[#allocation2 + $0x8] sm:$0xff]
      %v358 = vld [vmem:[#allocation2 + $0x10] sm:$0xff]
      %v359 = vld [vmem:[#allocation2 + $0x18] sm:$0xff]
      %v360 = vld [vmem:[#allocation2 + $0x20] sm:$0xff]
      %v361 = vld [vmem:[#allocation2 + $0x28] sm:$0xff]
      %v362 = vld [vmem:[#allocation2 + $0x30] sm:$0xff]
      %v363 = vld [vmem:[#allocation2 + $0x38] sm:$0xff]
      %v364 = vld [vmem:[#allocation2 + $0x40] sm:$0xff]
      %v365 = vld [vmem:[#allocation2 + $0x48] sm:$0xff]
      %v366 = vld [vmem:[#allocation2 + $0x50] sm:$0xff]
      %v367 = vld [vmem:[#allocation2 + $0x58] sm:$0xff]
      %v368 = vld [vmem:[#allocation2 + $0x60] sm:$0xf]
      %v369 = vld [vmem:[#allocation2 + $0x68] sm:$0xf]
      %v370 = vld [vmem:[#allocation2 + $0x70] sm:$0xf]
      %372 = vset.pattern.permute.xlu0 0
      %373 = vperm.xlu0 %372, %v172
      %v374 = vpop.permute.xlu0 %373
      %vm376 = vcmask 293888
      %v378 = vsel %vm376, %v171, 0
      %vm380 = vcmask 1043456
      %v382 = vsel %vm380, %v368, 0
      %v385 = vsel %vm380, %v369, 0
      %v388 = vsel %vm380, %v370, 0
      %390 = vmatprep.subr.mxu0 %v357
      %391 = vmatpush1.msra.mxu0 %v356
      %392 = vmatprep.subr.mxu0 %v360
      %393 = vmatpush1.msra.mxu0 %v359
      %394 = vmatprep.subr.mxu0 %v363
      %395 = vmatpush1.msra.mxu0 %v362
      %396 = vmatprep.subr.mxu0 %v366
      %397 = vmatpush1.msra.mxu0 %v365
      %398 = vmatprep.subr.mxu0 %v385
      %399 = vmatpush1.msra.mxu0 %v382
      %400 = vmatprep.subr.mxu0 0.0
      %401 = vmatpush1.msra.mxu0 0.0
      %402 = vmatprep.subr.mxu0 0.0
      %403 = vmatpush1.msra.mxu0 0.0
      %404 = vmatprep.subr.mxu0 0.0
      %405 = vmatpush1.msra.mxu0 0.0
      %406 = vmatprep.subr.mxu0 0.0
      %407 = vmatpush1.msra.mxu0 0.0
      %408 = vmatprep.subr.mxu0 0.0
      %409 = vmatpush1.msra.mxu0 0.0
      %410 = vmatprep.subr.mxu0 0.0
      %411 = vmatpush1.msra.mxu0 0.0
      %412 = vmatprep.subr.mxu0 0.0
      %413 = vmatpush1.msra.mxu0 0.0
      %414 = vmatprep.subr.mxu0 0.0
      %415 = vmatpush1.msra.mxu0 0.0
      %416 = vmatprep.subr.mxu0 0.0
      %417 = vmatpush1.msra.mxu0 0.0
      %418 = vmatprep.subr.mxu0 0.0
      %419 = vmatpush1.msra.mxu0 0.0
      %420 = vmatprep.subr.mxu0 0.0
      %421 = vmatpush1.msra.mxu0 0.0
      %422 = vmatprep.subr.mxu0 0.0
      %423 = vmatpush1.msra.mxu0 0.0
      %424 = vmatprep.subr.mxu0 0.0
      %425 = vmatpush1.msra.mxu0 0.0
      %426 = vmatprep.subr.mxu0 0.0
      %427 = vmatpush1.msra.mxu0 0.0
      %428 = vmatprep.subr.mxu0 0.0
      %429 = vmatpush1.msra.mxu0 0.0
      %430 = vmatprep.subr.mxu0 0.0
      %431 = vmatpush1.msra.mxu0 0.0
      %432 = vmatprep.subr.mxu0 0.0
      %433 = vmatpush1.msra.mxu0 0.0
      %434 = vmatprep.subr.mxu0 0.0
      %435 = vmatpush1.msra.mxu0 0.0
      %436 = vmatprep.subr.mxu0 0.0
      %437 = vmatpush1.msra.mxu0 0.0
      %438 = vmatprep.subr.mxu0 0.0
      %439 = vmatpush1.msra.mxu0 0.0
      %440 = vmatprep.subr.mxu0 0.0
      %441 = vmatpush1.msra.mxu0 0.0
      %442 = vmatprep.subr.mxu0 0.0
      %443 = vmatpush1.msra.mxu0 0.0
      %444 = vmatprep.subr.mxu0 0.0
      %445 = vmatpush1.msra.mxu0 0.0
      %446 = vmatprep.subr.mxu0 0.0
      %447 = vmatpush1.msra.mxu0 0.0
      %448 = vmatprep.subr.mxu0 0.0
      %449 = vmatpush1.msra.mxu0 0.0
      %450 = vmatprep.subr.mxu0 0.0
      %451 = vmatpush1.msra.mxu0 0.0
      %452 = vmatprep.subr.mxu0 0.0
      %453 = vmatpush1.msra.mxu0 0.0
      %454 = vmatprep.mubr.f32.mxu0 0.0
      %455 = vmatmul.mubr.f32.gmra.mrb[0].mxu0 %v378
      %v456 = vpop.f32.mrb[0].mxu0
      %v457 = vadd.f32 %v374, %v456
      %v458 = vpop.f32.mrb[0].mxu0
      %v459 = vadd.f32 %v374, %v458
      %460 = vdwg.mxu0
      %461 = vmatprep.subr.mxu0 0.0
      %462 = vmatpush1.msra.mxu0 %v358
      %463 = vmatprep.subr.mxu0 0.0
      %464 = vmatpush1.msra.mxu0 %v361
      %465 = vmatprep.subr.mxu0 0.0
      %466 = vmatpush1.msra.mxu0 %v364
      %467 = vmatprep.subr.mxu0 0.0
      %468 = vmatpush1.msra.mxu0 %v367
      %469 = vmatprep.subr.mxu0 0.0
      %470 = vmatpush1.msra.mxu0 %v388
      %471 = vmatprep.subr.mxu0 0.0
      %472 = vmatpush1.msra.mxu0 0.0
      %473 = vmatprep.subr.mxu0 0.0
      %474 = vmatpush1.msra.mxu0 0.0
      %475 = vmatprep.subr.mxu0 0.0
      %476 = vmatpush1.msra.mxu0 0.0
      %477 = vmatprep.subr.mxu0 0.0
      %478 = vmatpush1.msra.mxu0 0.0
      %479 = vmatprep.subr.mxu0 0.0
      %480 = vmatpush1.msra.mxu0 0.0
      %481 = vmatprep.subr.mxu0 0.0
      %482 = vmatpush1.msra.mxu0 0.0
      %483 = vmatprep.subr.mxu0 0.0
      %484 = vmatpush1.msra.mxu0 0.0
      %485 = vmatprep.subr.mxu0 0.0
      %486 = vmatpush1.msra.mxu0 0.0
      %487 = vmatprep.subr.mxu0 0.0
      %488 = vmatpush1.msra.mxu0 0.0
      %489 = vmatprep.subr.mxu0 0.0
      %490 = vmatpush1.msra.mxu0 0.0
      %491 = vmatprep.subr.mxu0 0.0
      %492 = vmatpush1.msra.mxu0 0.0
      %493 = vmatprep.subr.mxu0 0.0
      %494 = vmatpush1.msra.mxu0 0.0
      %495 = vmatprep.subr.mxu0 0.0
      %496 = vmatpush1.msra.mxu0 0.0
      %497 = vmatprep.subr.mxu0 0.0
      %498 = vmatpush1.msra.mxu0 0.0
      %499 = vmatprep.subr.mxu0 0.0
      %500 = vmatpush1.msra.mxu0 0.0
      %501 = vmatprep.subr.mxu0 0.0
      %502 = vmatpush1.msra.mxu0 0.0
      %503 = vmatprep.subr.mxu0 0.0
      %504 = vmatpush1.msra.mxu0 0.0
      %505 = vmatprep.subr.mxu0 0.0
      %506 = vmatpush1.msra.mxu0 0.0
      %507 = vmatprep.subr.mxu0 0.0
      %508 = vmatpush1.msra.mxu0 0.0
      %509 = vmatprep.subr.mxu0 0.0
      %510 = vmatpush1.msra.mxu0 0.0
      %511 = vmatprep.subr.mxu0 0.0
      %512 = vmatpush1.msra.mxu0 0.0
      %513 = vmatprep.subr.mxu0 0.0
      %514 = vmatpush1.msra.mxu0 0.0
      %515 = vmatprep.subr.mxu0 0.0
      %516 = vmatpush1.msra.mxu0 0.0
      %517 = vmatprep.subr.mxu0 0.0
      %518 = vmatpush1.msra.mxu0 0.0
      %519 = vmatprep.subr.mxu0 0.0
      %520 = vmatpush1.msra.mxu0 0.0
      %521 = vmatprep.subr.mxu0 0.0
      %522 = vmatpush1.msra.mxu0 0.0
      %523 = vmatprep.subr.mxu0 0.0
      %524 = vmatpush1.msra.mxu0 0.0
      %525 = vmatprep.mubr.f32.mxu0 0.0
      %526 = vmatmul.mubr.f32.gmra.mrb[0].mxu0 %v378
      %v527 = vpop.f32.mrb[0].mxu0
      %v528 = vadd.f32 %v374, %v527
      %v529 = vpop.f32.mrb[0].mxu0
      %530 = vdwg.mxu0
      %vm531 = vcmask 130048
      %532 = vst.msk [vmem:[%s170] sm:$0xff] %vm531, %v457
      %534 = vrot.lane.b32.xlu0 %v457, 126
      %v535 = vpop.permute.xlu0 %534
      %vm537 = vcmask 261248
      %538 = vst.msk [vmem:[%s170] sm:$0xff] %vm537, %v535
      %539 = vrot.lane.b32.xlu0 %v457, 124
      %v540 = vpop.permute.xlu0 %539
      %vm542 = vcmask 392448
      %543 = vst.msk [vmem:[%s170] sm:$0xff] %vm542, %v540
      %544 = vrot.lane.b32.xlu0 %v457, 122
      %v545 = vpop.permute.xlu0 %544
      %vm547 = vcmask 523648
      %548 = vst.msk [vmem:[%s170] sm:$0xff] %vm547, %v545
      %549 = vrot.lane.b32.xlu0 %v457, 120
      %v550 = vpop.permute.xlu0 %549
      %vm552 = vcmask 654848
      %553 = vst.msk [vmem:[%s170] sm:$0xff] %vm552, %v550
      %554 = vrot.lane.b32.xlu0 %v457, 118
      %v555 = vpop.permute.xlu0 %554
      %vm557 = vcmask 786048
      %558 = vst.msk [vmem:[%s170] sm:$0xff] %vm557, %v555
      %559 = vrot.lane.b32.xlu0 %v457, 116
      %v560 = vpop.permute.xlu0 %559
      %vm562 = vcmask 917248
      %563 = vst.msk [vmem:[%s170] sm:$0xff] %vm562, %v560
      %565 = vrot.lane.b32.xlu0 %v457, 114
      %v566 = vpop.permute.xlu0 %565
      %567 = vrot.lane.b32.xlu0 %v459, 114
      %v568 = vpop.permute.xlu0 %567
      %vm569 = vcmask 932864
      %v570 = vsel %vm569, %v566, %v568
      %vm572 = vcmask 1048448
      %573 = vst.msk [vmem:[%s170] sm:$0xff] %vm572, %v570
      %574 = vrot.lane.b32.xlu0 %v459, 112
      %v575 = vpop.permute.xlu0 %574
      %577 = vst.msk [vmem:[%s170 + $0x8] sm:$0xff] %vm531, %v575
      %578 = vrot.lane.b32.xlu0 %v459, 110
      %v579 = vpop.permute.xlu0 %578
      %581 = vst.msk [vmem:[%s170 + $0x8] sm:$0xff] %vm537, %v579
      %582 = vrot.lane.b32.xlu0 %v459, 108
      %v583 = vpop.permute.xlu0 %582
      %585 = vst.msk [vmem:[%s170 + $0x8] sm:$0xff] %vm542, %v583
      %586 = vrot.lane.b32.xlu0 %v459, 106
      %v587 = vpop.permute.xlu0 %586
      %589 = vst.msk [vmem:[%s170 + $0x8] sm:$0xff] %vm547, %v587
      %590 = vrot.lane.b32.xlu0 %v459, 104
      %v591 = vpop.permute.xlu0 %590
      %593 = vst.msk [vmem:[%s170 + $0x8] sm:$0xff] %vm552, %v591
      %594 = vrot.lane.b32.xlu0 %v459, 102
      %v595 = vpop.permute.xlu0 %594
      %597 = vst.msk [vmem:[%s170 + $0x8] sm:$0xff] %vm557, %v595
      %599 = vrot.lane.b32.xlu0 %v459, 100
      %v600 = vpop.permute.xlu0 %599
      %601 = vrot.lane.b32.xlu0 %v528, 100
      %v602 = vpop.permute.xlu0 %601
      %vm603 = vcmask 818176
      %v604 = vsel %vm603, %v600, %v602
      %606 = vst.msk [vmem:[%s170 + $0x8] sm:$0xff] %vm562, %v604
      %607 = vrot.lane.b32.xlu0 %v528, 98
      %v608 = vpop.permute.xlu0 %607
      %610 = vst.msk [vmem:[%s170 + $0x8] sm:$0xff] %vm572, %v608
      %p611 = scmp.lt.s32.totalorder %s14, 1
      %s612 = scalar_select %p611, %s14, 1
      %s613 = smul.addr %s612, 2
      %s614 = smul.addr %s613, 8
      %s615 = scalar_lea.vmem %s3, %s614
      // Predicated region
      $region33: #{_conv_pbc_forward.1} parent=31 // pred_check
        %p616 = pneg %p100
      $region34: #{_conv_pbc_forward.1} parent=31 // pred_check_branch
        %618 = sbr.rel (%p616) target = $region36
      $region35: #{_conv_pbc_forward.1} parent=31 // pred_region
        _
      $region36: #{_conv_pbc_forward.1} parent=31 // pred_fallthru
        _
    $region32: #{_conv_pbc_forward.1} parent=5 // pred_fallthru
      _
    %p619 = scmp.le.s32.totalorder 2, %s9
    // Predicated region
    $region37: #{_conv_pbc_forward.1} parent=5 // pred_check
      %p620 = pneg %p619
    $region38: #{_conv_pbc_forward.1} parent=5 // pred_check_branch
      %622 = sbr.rel (%p620) target = $region40
    $region39: #{_conv_pbc_forward.1} parent=5 // pred_region
      %s623 = ssub.s32 %s9, 2
      // Predicated region
      $region41: #{_conv_pbc_forward.1} parent=39 // pred_check
        %p624 = pneg %p106
      $region42: #{_conv_pbc_forward.1} parent=39 // pred_check_branch
        %626 = sbr.rel (%p624) target = $region44
      $region43: #{_conv_pbc_forward.1} parent=39 // pred_region
        %p627 = scmp.lt.s32.totalorder %s15, 1
        %s628 = scalar_select %p627, %s15, 1
        %s629 = smul.addr %s628, 2
        %s630 = smul.addr %s629, 8
        %s631 = scalar_lea.vmem %s3, %s630
      $region44: #{_conv_pbc_forward.1} parent=39 // pred_fallthru
        _
    $region40: #{_conv_pbc_forward.1} parent=5 // pred_fallthru
      _
  $region6: #{_conv_pbc_forward.1} parent=0 // loop_footer
    %s13 = sadd.s32 1, %s9
  $region7: #{_conv_pbc_forward.1} parent=0 // loop_footer_branch
    %8 = sbr.rel target = $region3
  $region8: #{_conv_pbc_forward.1} parent=0 // loop_exit
    _

</llo_original>
